<compile_context>
chip_gen: v5e
topology: v5e:2x2
jax: 0.10.0
libtpu: 0.0.40
codegen_flags: <defaults>
</compile_context>

<pallas_src>
import numpy as np

import jax
import jax.numpy as jnp
from jax.experimental import pallas as pl
from jax.experimental.pallas import tpu as pltpu


# -----------------------------------------------------------------------------
# Kernel: per-sample attention pooling + normalize; finalize center update +
# intra/inter loss on the last grid step.
# -----------------------------------------------------------------------------
def _make_kernel(B, M, N, alpha, margin):
    alpha = float(alpha)
    margin = float(margin)
    inv_B = 1.0 / float(B)

    def kernel(att_ref, feat_ref, fc_ref, mask_ref, im_ref,   # VMEM inputs
               loss_ref, fm_ref, fcts_ref):                   # VMEM outputs
        b = pl.program_id(0)

        # ---- per-sample: attention pooling on the MXU + L2 normalize --------
        # att_ref: (M, HW), feat_ref: (N, HW); contraction over the spatial axis
        # which sits on the 128-lane (fast) axis.  bf16 in, f32 accumulate.
        # NOTE: M (~4) underfills MXU rows; kernel is HBM-bound so we accept it
        # rather than paying an extra transpose of the tiny result.
        fm = jax.lax.dot_general(
            att_ref[...], feat_ref[...],
            dimension_numbers=(((1,), (1,)), ((), ())),
            preferred_element_type=jnp.float32)                        # (M, N)
        # F.normalize(p=2, dim=-1, eps=1e-12) == x * rsqrt(max(sum x^2, eps^2))
        sumsq = jnp.sum(fm * fm, axis=-1, keepdims=True)               # (M, 1)
        fm = fm * jax.lax.rsqrt(jnp.maximum(sumsq, 1e-24))
        fm_ref[b] = fm            # resident (B, M, N) output, filled per step

        # ---- finalize once on the last grid step -----------------------------
        @pl.when(b == B - 1)
        def _():
            fm_all = fm_ref[...]                                       # (B, M, N)
            fc = fc_ref[...]                                           # (M, N)
            mask = mask_ref[...]                                       # (B, 1, 1)
            im = im_ref[...]                                           # (B, 1, 1)

            # centers: fcts = alpha * mean_B((fm - fc) * [y==0]) + fc
            acc = jnp.sum(fm_all * mask, axis=0)                       # (M, N)
            cnt = jnp.sum(mask, axis=0)                                # (1, 1)
            fcts = alpha * ((acc - fc * cnt) * inv_B) + fc
            fcts_ref[...] = fcts

            # intra-class: mean_B relu(||fm_b - fcts||_F * sign(im_b) - im_b)
            diff = fm_all - fcts[None, :, :]                           # (B, M, N)
            ss = jnp.sum(jnp.sum(diff * diff, axis=-1, keepdims=True),
                         axis=1, keepdims=True)                        # (B, 1, 1)
            nrm = jnp.sqrt(ss)
            sgn = jnp.where(im > 0.0, 1.0, jnp.where(im < 0.0, -1.0, 0.0))
            intra = jnp.sum(jnp.maximum(nrm * sgn - im, 0.0), axis=0)  # (1, 1)
            intra_loss = intra * inv_B

            # inter-class: sum_{j<k} relu(margin - ||fcts_j - fcts_k||) / (M*alpha)
            pd = jnp.expand_dims(fcts, 1) - jnp.expand_dims(fcts, 0)   # (M, M, N)
            dist = jnp.sqrt(jnp.sum(pd * pd, axis=-1))                 # (M, M)
            row = jax.lax.broadcasted_iota(jnp.int32, (M, M), 0)
            col = jax.lax.broadcasted_iota(jnp.int32, (M, M), 1)
            upper = (row < col).astype(jnp.float32)
            pen = jnp.maximum(margin - dist, 0.0) * upper
            inter = jnp.sum(jnp.sum(pen, axis=-1, keepdims=True),
                            axis=0, keepdims=True)                     # (1, 1)
            inter_loss = inter * (1.0 / (M * alpha))

            loss_ref[...] = intra_loss + inter_loss

    return kernel


# -----------------------------------------------------------------------------
# Wrapper-side bilinear resize (F.interpolate(..., mode='bilinear',
# align_corners=True)) for the AH,AW != H,W path of the module.
# -----------------------------------------------------------------------------
def _bilinear_align_corners(x, out_h, out_w):
    B, C, H, W = x.shape
    if (H, W) == (out_h, out_w):
        return x

    def coords(n_in, n_out):
        if n_out == 1:
            s = jnp.zeros((n_out,), jnp.float32)
        else:
            s = jnp.arange(n_out, dtype=jnp.float32) * ((n_in - 1) / (n_out - 1))
        i0 = jnp.clip(jnp.floor(s).astype(jnp.int32), 0, n_in - 1)
        i1 = jnp.clip(i0 + 1, 0, n_in - 1)
        return i0, i1, s - i0.astype(jnp.float32)

    y0, y1, fy = coords(H, out_h)
    x0, x1, fx = coords(W, out_w)
    r0, r1 = jnp.take(x, y0, axis=2), jnp.take(x, y1, axis=2)
    c00, c01 = jnp.take(r0, x0, axis=3), jnp.take(r0, x1, axis=3)
    c10, c11 = jnp.take(r1, x0, axis=3), jnp.take(r1, x1, axis=3)
    fy = fy[None, None, :, None]
    fx = fx[None, None, None, :]
    top = c00 * (1.0 - fx) + c01 * fx
    bot = c10 * (1.0 - fx) + c11 * fx
    return top * (1.0 - fy) + bot * fy


# -----------------------------------------------------------------------------
# Wrapper
# -----------------------------------------------------------------------------
def auxiliary_loss_v2(feature_map_d, attentions, y, feature_centers,
                      inner_margin_table, alpha=0.05, margin=1.0,
                      compute_dtype=jnp.bfloat16):
    """Forward pass of Auxiliary_Loss_v2.

    Returns (loss, feature_matrix, new_feature_centers).  `new_feature_centers`
    is what the PyTorch module assigns to self.feature_centers in training mode
    (before any distributed all_reduce), so the caller can update its buffer
    functionally.
    """
    B, N, H, W = feature_map_d.shape
    _, M, AH, AW = attentions.shape
    if (AH, AW) != (H, W):
        attentions = _bilinear_align_corners(attentions, H, W)
    HW = H * W

    # bf16 MXU inputs halve the dominant HBM traffic; accumulation is f32 in-kernel.
    a = attentions.reshape(B, M, HW).astype(compute_dtype)
    f = feature_map_d.reshape(B, N, HW).astype(compute_dtype)
    fc = feature_centers.astype(jnp.float32)
    mask = (y == 0).astype(jnp.float32).reshape(B, 1, 1)
    im = inner_margin_table.astype(jnp.float32)[y].reshape(B, 1, 1)

    # Explicit VMEM budget: double-buffered per-sample input blocks + resident
    # small inputs + resident f32 outputs, with generous headroom; capped at the
    # v7x per-core physical ceiling so the same call compiles on v5e/v6e/v7x.
    itemsize = np.dtype(compute_dtype).itemsize
    est = (2 * (M * HW + N * HW) * itemsize        # double-buffered att/feat blocks
           + (M * N + 2 * B) * 4                   # resident fc, mask, im
           + (B * M * N + M * N + 1) * 4)          # resident fm, fcts, loss outputs
    vmem_limit = int(min(max(4 * est, 16 << 20), 64 << 20))

    kernel = _make_kernel(B, M, N, alpha, margin)
    loss, fm, fcts = pl.pallas_call(
        kernel,
        out_shape=(
            jax.ShapeDtypeStruct((1, 1), jnp.float32),       # loss
            jax.ShapeDtypeStruct((B, M, N), jnp.float32),    # feature_matrix
            jax.ShapeDtypeStruct((M, N), jnp.float32),       # updated centers
        ),
        grid_spec=pltpu.PrefetchScalarGridSpec(
            num_scalar_prefetch=0,
            grid=(B,),                                        # stream one sample per step
            in_specs=[
                pl.BlockSpec((pl.Squeezed(), M, HW), lambda b: (b, 0, 0)),
                pl.BlockSpec((pl.Squeezed(), N, HW), lambda b: (b, 0, 0)),
                pl.BlockSpec((M, N), lambda b: (0, 0)),       # resident, fetched once
                pl.BlockSpec((B, 1, 1), lambda b: (0, 0, 0)),
                pl.BlockSpec((B, 1, 1), lambda b: (0, 0, 0)),
            ],
            out_specs=(
                pl.BlockSpec((1, 1), lambda b: (0, 0)),
                pl.BlockSpec((B, M, N), lambda b: (0, 0, 0)), # resident across the grid
                pl.BlockSpec((M, N), lambda b: (0, 0)),
            ),
        ),
        compiler_params=pltpu.CompilerParams(
            dimension_semantics=("arbitrary",),               # finalize carries state
            vmem_limit_bytes=vmem_limit),
    )(a, f, fc, mask, im)

    # TODO(synk): wrap in jax.custom_vjp if gradients through this loss are needed
    # (pallas_call has no autodiff rule); forward-only here.  The distributed
    # all_reduce of the centers in the PyTorch module is the caller's job.
    return loss[0, 0], fm, fcts


# -----------------------------------------------------------------------------
# Pure-JAX reference (mirrors the PyTorch forward; optional input cast isolates
# the bf16 pooling-input rounding from kernel correctness).
# -----------------------------------------------------------------------------
def _reference(feature_map_d, attentions, y, feature_centers, inner_margin_table,
               alpha, margin, compute_dtype=jnp.float32):
    M = attentions.shape[1]
    a = attentions.astype(compute_dtype)
    f = feature_map_d.astype(compute_dtype)
    fm = jnp.einsum('imjk,injk->imn', a, f, preferred_element_type=jnp.float32)
    nrm = jnp.sqrt(jnp.sum(fm * fm, axis=-1, keepdims=True))
    fm = fm / jnp.maximum(nrm, 1e-12)
    mask = (y == 0).astype(jnp.float32)[:, None, None]
    fcts = alpha * jnp.mean((fm - feature_centers) * mask, axis=0) + feature_centers
    im = inner_margin_table[y]
    intra = jnp.mean(jax.nn.relu(
        jnp.sqrt(jnp.sum((fm - fcts) ** 2, axis=(1, 2))) * jnp.sign(im) - im))
    inter = 0.0
    for j in range(M):
        for k in range(j + 1, M):
            inter = inter + jax.nn.relu(
                margin - jnp.sqrt(jnp.sum((fcts[j] - fcts[k]) ** 2)))
    inter = inter / M / alpha
    return intra + inter, fm, fcts


if __name__ == "__main__":
    # module hyper-params: M attention maps, N feature dim, C classes
    M, N, C = 4, 32, 2
    B, H, W = 2, 16, 16
    alpha, margin = 0.05, 1.0

    key = jax.random.PRNGKey(0)
    k1, k2, k3 = jax.random.split(key, 3)
    feature_map_d = jax.random.normal(k1, (B, N, H, W), dtype=jnp.float32)
    attentions = jax.nn.relu(jax.random.normal(k2, (B, M, H, W), dtype=jnp.float32))
    y = jax.random.randint(k3, (B,), 0, C, dtype=jnp.int32)

    # deterministic buffers (as registered in __init__)
    feature_centers = jnp.zeros((M, N), dtype=jnp.float32)
    inner_margin_table = jnp.array([0.1, 5.0], dtype=jnp.float32)

    loss, feat_mat, new_centers = auxiliary_loss_v2(
        feature_map_d, attentions, y, feature_centers, inner_margin_table,
        alpha=alpha, margin=margin)
    jax.block_until_ready((loss, feat_mat, new_centers))

    # (a) tight check vs a reference using the same bf16 pooling inputs
    #     (isolates kernel correctness from the bf16 input-cast rounding).
    rl, rfm, rfc = _reference(feature_map_d, attentions, y, feature_centers,
                              inner_margin_table, alpha, margin,
                              compute_dtype=jnp.bfloat16)
    assert jnp.allclose(feat_mat, rfm, atol=2e-3, rtol=2e-3), "feature_matrix mismatch"
    assert jnp.allclose(new_centers, rfc, atol=2e-3, rtol=2e-3), "centers mismatch"
    assert jnp.allclose(loss, rl, atol=2e-3, rtol=2e-3), "loss mismatch"

    # (b) looser check vs the full-f32 PyTorch-equivalent reference
    #     (quantifies the bf16 input cast recommended by the perf review).
    fl, ffm, ffc = _reference(feature_map_d, attentions, y, feature_centers,
                              inner_margin_table, alpha, margin,
                              compute_dtype=jnp.float32)
    assert jnp.allclose(feat_mat, ffm, atol=2e-2, rtol=2e-2), "feature_matrix drift vs f32"
    assert jnp.allclose(new_centers, ffc, atol=2e-2, rtol=2e-2), "centers drift vs f32"
    assert jnp.allclose(loss, fl, atol=2e-2, rtol=2e-2), "loss drift vs f32"

    print("KERNEL_OK")
</pallas_src>

<mosaic_0001>
module attributes {stable_mosaic.version = 11 : i64} {
  func.func @kernel(%arg0: i32, %arg1: memref<1x4x256xbf16, #tpu.memory_space<vmem>>, %arg2: memref<1x32x256xbf16, #tpu.memory_space<vmem>>, %arg3: memref<4x32xf32, #tpu.memory_space<vmem>>, %arg4: memref<2x1x1xf32, #tpu.memory_space<vmem>>, %arg5: memref<2x1x1xf32, #tpu.memory_space<vmem>>, %arg6: memref<1x1xf32, #tpu.memory_space<vmem>>, %arg7: memref<2x4x32xf32, #tpu.memory_space<vmem>>, %arg8: memref<4x32xf32, #tpu.memory_space<vmem>>) attributes {dimension_semantics = [#tpu.dimension_semantics<arbitrary>], iteration_bounds = array<i64: 2>, scalar_prefetch = 0 : i64, scratch_operands = 0 : i64, tpu.core_type = #tpu.core_type<tc>, window_params = [{transform_indices = @transform_0, window_bounds = array<i64: 1, 4, 256>}, {transform_indices = @transform_1, window_bounds = array<i64: 1, 32, 256>}, {pipeline_mode = #tpu.pipeline_mode<synchronous>, transform_indices = @transform_2, window_bounds = array<i64: 4, 32>}, {pipeline_mode = #tpu.pipeline_mode<synchronous>, transform_indices = @transform_3, window_bounds = array<i64: 2, 1, 1>}, {pipeline_mode = #tpu.pipeline_mode<synchronous>, transform_indices = @transform_4, window_bounds = array<i64: 2, 1, 1>}, {pipeline_mode = #tpu.pipeline_mode<synchronous>, transform_indices = @transform_5, window_bounds = array<i64: 1, 1>}, {pipeline_mode = #tpu.pipeline_mode<synchronous>, transform_indices = @transform_6, window_bounds = array<i64: 2, 4, 32>}, {pipeline_mode = #tpu.pipeline_mode<synchronous>, transform_indices = @transform_7, window_bounds = array<i64: 4, 32>}]} {
    %c0 = arith.constant 0 : index
    %c0_0 = arith.constant 0 : index
    %c0_1 = arith.constant 0 : index
    %0 = vector.load %arg1[%c0, %c0_0, %c0_1] : memref<1x4x256xbf16, #tpu.memory_space<vmem>>, vector<1x4x256xbf16>
    %1 = vector.shape_cast %0 : vector<1x4x256xbf16> to vector<4x256xbf16>
    %c0_2 = arith.constant 0 : index
    %c0_3 = arith.constant 0 : index
    %c0_4 = arith.constant 0 : index
    %2 = vector.load %arg2[%c0_2, %c0_3, %c0_4] : memref<1x32x256xbf16, #tpu.memory_space<vmem>>, vector<1x32x256xbf16>
    %3 = vector.shape_cast %2 : vector<1x32x256xbf16> to vector<32x256xbf16>
    %cst = arith.constant dense<0.000000e+00> : vector<4x32xf32>
    %4 = tpu.matmul %1, %3, %cst {dimension_numbers = #tpu.dot_dimension_numbers<[1], [1], [0], [0], [0, 0, 1, 0], [], []>} : vector<4x256xbf16>, vector<32x256xbf16>, vector<4x32xf32> -> vector<4x32xf32>
    %5 = arith.mulf %4, %4 : vector<4x32xf32>
    %cst_5 = arith.constant dense<0.000000e+00> : vector<4xf32>
    %6 = vector.multi_reduction <add>, %5, %cst_5 [1] : vector<4x32xf32> to vector<4xf32>
    %7 = vector.shape_cast %6 : vector<4xf32> to vector<4x1xf32>
    %cst_6 = arith.constant 1.000000e-24 : f32
    %8 = vector.broadcast %cst_6 : f32 to vector<4x1xf32>
    %9 = arith.maximumf %7, %8 : vector<4x1xf32>
    %10 = math.rsqrt %9 : vector<4x1xf32>
    %11 = vector.broadcast %10 : vector<4x1xf32> to vector<4x32xf32>
    %12 = arith.mulf %4, %11 : vector<4x32xf32>
    %13 = arith.index_cast %arg0 : i32 to index
    %c0_7 = arith.constant 0 : index
    %c0_8 = arith.constant 0 : index
    %14 = vector.load %arg7[%13, %c0_7, %c0_8] : memref<2x4x32xf32, #tpu.memory_space<vmem>>, vector<1x4x32xf32>
    %15 = vector.shape_cast %14 : vector<1x4x32xf32> to vector<4x32xf32>
    %16 = vector.shape_cast %12 : vector<4x32xf32> to vector<1x4x32xf32>
    tpu.vector_store %arg7[%13, %c0_7, %c0_8], %16 {strides = array<i32>} : memref<2x4x32xf32, #tpu.memory_space<vmem>>, vector<1x4x32xf32>,
    %c1_i32 = arith.constant 1 : i32
    %17 = arith.cmpi eq, %arg0, %c1_i32 : i32
    %18 = arith.extui %17 : i1 to i32
    %c0_i32 = arith.constant 0 : i32
    %19 = arith.cmpi ne, %18, %c0_i32 : i32
    scf.if %19 {
      %c0_9 = arith.constant 0 : index
      %c0_10 = arith.constant 0 : index
      %c0_11 = arith.constant 0 : index
      %20 = vector.load %arg7[%c0_9, %c0_10, %c0_11] : memref<2x4x32xf32, #tpu.memory_space<vmem>>, vector<2x4x32xf32>
      %c0_12 = arith.constant 0 : index
      %c0_13 = arith.constant 0 : index
      %21 = vector.load %arg3[%c0_12, %c0_13] : memref<4x32xf32, #tpu.memory_space<vmem>>, vector<4x32xf32>
      %c0_14 = arith.constant 0 : index
      %c0_15 = arith.constant 0 : index
      %c0_16 = arith.constant 0 : index
      %22 = vector.load %arg4[%c0_14, %c0_15, %c0_16] : memref<2x1x1xf32, #tpu.memory_space<vmem>>, vector<2x1x1xf32>
      %c0_17 = arith.constant 0 : index
      %c0_18 = arith.constant 0 : index
      %c0_19 = arith.constant 0 : index
      %23 = vector.load %arg5[%c0_17, %c0_18, %c0_19] : memref<2x1x1xf32, #tpu.memory_space<vmem>>, vector<2x1x1xf32>
      %24 = vector.broadcast %22 : vector<2x1x1xf32> to vector<2x4x32xf32>
      %25 = arith.mulf %20, %24 : vector<2x4x32xf32>
      %cst_20 = arith.constant dense<0.000000e+00> : vector<4x32xf32>
      %26 = vector.multi_reduction <add>, %25, %cst_20 [0] : vector<2x4x32xf32> to vector<4x32xf32>
      %cst_21 = arith.constant dense<0.000000e+00> : vector<1x1xf32>
      %27 = vector.multi_reduction <add>, %22, %cst_21 [0] : vector<2x1x1xf32> to vector<1x1xf32>
      %28 = vector.broadcast %27 : vector<1x1xf32> to vector<4x32xf32>
      %29 = arith.mulf %21, %28 : vector<4x32xf32>
      %30 = arith.subf %26, %29 : vector<4x32xf32>
      %cst_22 = arith.constant 5.000000e-01 : f32
      %31 = vector.broadcast %cst_22 : f32 to vector<4x32xf32>
      %32 = arith.mulf %30, %31 : vector<4x32xf32>
      %cst_23 = arith.constant 5.000000e-02 : f32
      %33 = vector.broadcast %cst_23 : f32 to vector<4x32xf32>
      %34 = arith.mulf %33, %32 : vector<4x32xf32>
      %35 = arith.addf %34, %21 : vector<4x32xf32>
      %c0_24 = arith.constant 0 : index
      %c0_25 = arith.constant 0 : index
      %36 = vector.load %arg8[%c0_24, %c0_25] : memref<4x32xf32, #tpu.memory_space<vmem>>, vector<4x32xf32>
      tpu.vector_store %arg8[%c0_24, %c0_25], %35 {strides = array<i32>} : memref<4x32xf32, #tpu.memory_space<vmem>>, vector<4x32xf32>,
      %37 = vector.shape_cast %35 : vector<4x32xf32> to vector<1x4x32xf32>
      %38 = vector.broadcast %37 : vector<1x4x32xf32> to vector<2x4x32xf32>
      %39 = arith.subf %20, %38 : vector<2x4x32xf32>
      %40 = arith.mulf %39, %39 : vector<2x4x32xf32>
      %cst_26 = arith.constant dense<0.000000e+00> : vector<2x4xf32>
      %41 = vector.multi_reduction <add>, %40, %cst_26 [2] : vector<2x4x32xf32> to vector<2x4xf32>
      %42 = vector.shape_cast %41 : vector<2x4xf32> to vector<2x4x1xf32>
      %cst_27 = arith.constant dense<0.000000e+00> : vector<2x1xf32>
      %43 = vector.multi_reduction <add>, %42, %cst_27 [1] : vector<2x4x1xf32> to vector<2x1xf32>
      %44 = vector.shape_cast %43 : vector<2x1xf32> to vector<2x1x1xf32>
      %45 = math.sqrt %44 : vector<2x1x1xf32>
      %cst_28 = arith.constant 0.000000e+00 : f32
      %46 = vector.broadcast %cst_28 : f32 to vector<2x1x1xf32>
      %47 = arith.cmpf ogt, %23, %46 : vector<2x1x1xf32>
      %cst_29 = arith.constant 0.000000e+00 : f32
      %48 = vector.broadcast %cst_29 : f32 to vector<2x1x1xf32>
      %49 = arith.cmpf olt, %23, %48 : vector<2x1x1xf32>
      %cst_30 = arith.constant -1.000000e+00 : f32
      %cst_31 = arith.constant 0.000000e+00 : f32
      %50 = vector.broadcast %cst_30 : f32 to vector<2x1x1xf32>
      %51 = vector.broadcast %cst_31 : f32 to vector<2x1x1xf32>
      %52 = arith.select %49, %50, %51 : vector<2x1x1xi1>, vector<2x1x1xf32>
      %cst_32 = arith.constant 1.000000e+00 : f32
      %53 = vector.broadcast %cst_32 : f32 to vector<2x1x1xf32>
      %54 = arith.select %47, %53, %52 : vector<2x1x1xi1>, vector<2x1x1xf32>
      %55 = arith.mulf %45, %54 : vector<2x1x1xf32>
      %56 = arith.subf %55, %23 : vector<2x1x1xf32>
      %cst_33 = arith.constant 0.000000e+00 : f32
      %57 = vector.broadcast %cst_33 : f32 to vector<2x1x1xf32>
      %58 = arith.maximumf %56, %57 : vector<2x1x1xf32>
      %cst_34 = arith.constant dense<0.000000e+00> : vector<1x1xf32>
      %59 = vector.multi_reduction <add>, %58, %cst_34 [0] : vector<2x1x1xf32> to vector<1x1xf32>
      %cst_35 = arith.constant 5.000000e-01 : f32
      %60 = vector.broadcast %cst_35 : f32 to vector<1x1xf32>
      %61 = arith.mulf %59, %60 : vector<1x1xf32>
      %62 = vector.shape_cast %35 : vector<4x32xf32> to vector<4x1x32xf32>
      %63 = vector.shape_cast %35 : vector<4x32xf32> to vector<1x4x32xf32>
      %64 = vector.broadcast %62 : vector<4x1x32xf32> to vector<4x4x32xf32>
      %65 = vector.broadcast %63 : vector<1x4x32xf32> to vector<4x4x32xf32>
      %66 = arith.subf %64, %65 : vector<4x4x32xf32>
      %67 = arith.mulf %66, %66 : vector<4x4x32xf32>
      %cst_36 = arith.constant dense<0.000000e+00> : vector<4x4xf32>
      %68 = vector.multi_reduction <add>, %67, %cst_36 [2] : vector<4x4x32xf32> to vector<4x4xf32>
      %69 = math.sqrt %68 : vector<4x4xf32>
      %70 = tpu.iota {dimensions = array<i32: 0>} : vector<4x4xi32>
      %71 = tpu.iota {dimensions = array<i32: 1>} : vector<4x4xi32>
      %72 = arith.cmpi slt, %70, %71 : vector<4x4xi32>
      %73 = arith.extui %72 : vector<4x4xi1> to vector<4x4xi32>
      %74 = arith.sitofp %73 : vector<4x4xi32> to vector<4x4xf32>
      %cst_37 = arith.constant 1.000000e+00 : f32
      %75 = vector.broadcast %cst_37 : f32 to vector<4x4xf32>
      %76 = arith.subf %75, %69 : vector<4x4xf32>
      %cst_38 = arith.constant 0.000000e+00 : f32
      %77 = vector.broadcast %cst_38 : f32 to vector<4x4xf32>
      %78 = arith.maximumf %76, %77 : vector<4x4xf32>
      %79 = arith.mulf %78, %74 : vector<4x4xf32>
      %cst_39 = arith.constant dense<0.000000e+00> : vector<4xf32>
      %80 = vector.multi_reduction <add>, %79, %cst_39 [1] : vector<4x4xf32> to vector<4xf32>
      %81 = vector.shape_cast %80 : vector<4xf32> to vector<4x1xf32>
      %cst_40 = arith.constant dense<0.000000e+00> : vector<1xf32>
      %82 = vector.multi_reduction <add>, %81, %cst_40 [0] : vector<4x1xf32> to vector<1xf32>
      %83 = vector.shape_cast %82 : vector<1xf32> to vector<1x1xf32>
      %cst_41 = arith.constant 5.000000e+00 : f32
      %84 = vector.broadcast %cst_41 : f32 to vector<1x1xf32>
      %85 = arith.mulf %83, %84 : vector<1x1xf32>
      %86 = arith.addf %61, %85 : vector<1x1xf32>
      %c0_42 = arith.constant 0 : index
      %c0_43 = arith.constant 0 : index
      %87 = vector.load %arg6[%c0_42, %c0_43] : memref<1x1xf32, #tpu.memory_space<vmem>>, vector<1x1xf32>
      tpu.vector_store %arg6[%c0_42, %c0_43], %86 {strides = array<i32>} : memref<1x1xf32, #tpu.memory_space<vmem>>, vector<1x1xf32>,
    } else {
    }
    return
  }
  func.func @transform_0(%arg0: i32) -> (i32, i32, i32) {
    %c0_i32 = arith.constant 0 : i32
    %c0_i32_0 = arith.constant 0 : i32
    %c0_i32_1 = arith.constant 0 : i32
    return %arg0, %c0_i32, %c0_i32_0 : i32, i32, i32
  }
  func.func @transform_1(%arg0: i32) -> (i32, i32, i32) {
    %c0_i32 = arith.constant 0 : i32
    %c0_i32_0 = arith.constant 0 : i32
    %c0_i32_1 = arith.constant 0 : i32
    return %arg0, %c0_i32, %c0_i32_0 : i32, i32, i32
  }
  func.func @transform_2(%arg0: i32) -> (i32, i32) {
    %c0_i32 = arith.constant 0 : i32
    %c0_i32_0 = arith.constant 0 : i32
    %c0_i32_1 = arith.constant 0 : i32
    return %c0_i32, %c0_i32_0 : i32, i32
  }
  func.func @transform_3(%arg0: i32) -> (i32, i32, i32) {
    %c0_i32 = arith.constant 0 : i32
    %c0_i32_0 = arith.constant 0 : i32
    %c0_i32_1 = arith.constant 0 : i32
    %c0_i32_2 = arith.constant 0 : i32
    return %c0_i32, %c0_i32_0, %c0_i32_1 : i32, i32, i32
  }
  func.func @transform_4(%arg0: i32) -> (i32, i32, i32) {
    %c0_i32 = arith.constant 0 : i32
    %c0_i32_0 = arith.constant 0 : i32
    %c0_i32_1 = arith.constant 0 : i32
    %c0_i32_2 = arith.constant 0 : i32
    return %c0_i32, %c0_i32_0, %c0_i32_1 : i32, i32, i32
  }
  func.func @transform_5(%arg0: i32) -> (i32, i32) {
    %c0_i32 = arith.constant 0 : i32
    %c0_i32_0 = arith.constant 0 : i32
    %c0_i32_1 = arith.constant 0 : i32
    return %c0_i32, %c0_i32_0 : i32, i32
  }
  func.func @transform_6(%arg0: i32) -> (i32, i32, i32) {
    %c0_i32 = arith.constant 0 : i32
    %c0_i32_0 = arith.constant 0 : i32
    %c0_i32_1 = arith.constant 0 : i32
    %c0_i32_2 = arith.constant 0 : i32
    return %c0_i32, %c0_i32_0, %c0_i32_1 : i32, i32, i32
  }
  func.func @transform_7(%arg0: i32) -> (i32, i32) {
    %c0_i32 = arith.constant 0 : i32
    %c0_i32_0 = arith.constant 0 : i32
    %c0_i32_1 = arith.constant 0 : i32
    return %c0_i32, %c0_i32_0 : i32, i32
  }
}

</mosaic_0001>

<llo_original>
// kernel: tpu_custom_call.1
$region0: #{tpu_custom_call.1}
  #allocation0 [shape = 'u32[]', space=smem, size = 0x4, offset = 0x4, fixed_abs, tag = 'smem constant byte address 0x4 - core index']
  #allocation1 [shape = 'u32[72,128]{1,0:T(1,128)}', space=vmem, size = 0x9000, scoped, tag = 'internal scratch']
  %s0 = inlined_call_operand.hbm [shape: bf16[2,4,256], index: 0, kind: input, shape index: {}]
  %s1 = inlined_call_operand.hbm [shape: bf16[2,32,256], index: 1, kind: input, shape index: {}]
  %s2 = inlined_call_operand.vmem [shape: f32[4,32], index: 2, kind: input, shape index: {}]
  %s3 = inlined_call_operand.vmem [shape: f32[2,1,1], index: 3, kind: input, shape index: {}]
  %s4 = inlined_call_operand.vmem [shape: f32[2,1,1], index: 4, kind: input, shape index: {}]
  %s5 = inlined_call_operand.hbm [shape: f32[1,1], index: 5, kind: output, shape index: {0}]
  %s6 = inlined_call_operand.hbm [shape: f32[2,4,32], index: 6, kind: output, shape index: {1}]
  %s7 = inlined_call_operand.hbm [shape: f32[4,32], index: 7, kind: output, shape index: {2}]
  %8 = xla_tuple %s5, %s6, %s7
  %s9 = sld [smem:[#allocation0]]
  $region81: #{tpu_custom_call.1} parent=0
    _
  %s11 = ssub.s32 1, %s9
  %s12 = scalar_select 0, %s11, %s9
  $region1: #{tpu_custom_call.1} parent=0
    #allocation2 [shape = 'u8[4096]{0}', space=vmem, size = 0x1000, scoped, tag = 'input window, operand 0']
    #allocation3 [shape = 's32[2]{0}', space=sflag, size = 0x8, scoped, tag = 'scoped memory for tpu_custom_call.1']
    #allocation4 [shape = 's32[2]{0}', space=sflag, size = 0x8, scoped, tag = 'scoped memory for tpu_custom_call.1']
    #allocation5 [shape = 'u8[32768]{0}', space=vmem, size = 0x8000, scoped, tag = 'input window, operand 1']
    #allocation6 [shape = 's32[2]{0}', space=sflag, size = 0x8, scoped, tag = 'scoped memory for tpu_custom_call.1']
    #allocation7 [shape = 'u8[512]{0}', space=vmem, size = 0x400, scoped, tag = 'output window, operand 0, single buffered']
    #allocation8 [shape = 'u8[4096]{0}', space=vmem, size = 0x1000, scoped, tag = 'output window, operand 1, single buffered']
    #allocation9 [shape = 's32[1]{0}', space=sflag, size = 0x4, scoped, tag = 'scoped memory for tpu_custom_call.1']
    #allocation10 [shape = 'u8[2048]{0}', space=vmem, size = 0x800, scoped, tag = 'output window, operand 2, single buffered']
    %13 = vsyncpa [#allocation3], 0
    %s14 = scalar_lea.sflag [#allocation3], 1
    %15 = vsyncpa %s14, 0
    %16 = vsyncpa [#allocation6], 0
    %s17 = scalar_lea.sflag [#allocation6], 1
    %18 = vsyncpa %s17, 0
    %19 = vsyncpa [#allocation4], 0
    %20 = vsyncpa [#allocation9], 0
    loop: start=0, step=1, limit=4
    $region2: #{tpu_custom_call.1} parent=1 // loop_pre_header
      _
    $region3: #{tpu_custom_call.1} parent=1 // loop_header
      %s22 = sphi 0, %s26
      %p23 = scmp.ge.s32.totalorder %s22, 4
      %s32 = sphi 0, %s34
      %s35 = sphi 0, %s32
      %s36 = sphi 0, %s35
      %s52 = sphi 0, %s36
      %s58 = sphi 0, %s60
      %s61 = sphi 0, %s58
      %s62 = sphi 0, %s61
      %s78 = sphi 0, %s62
      %s82 = sphi 0, %s82
      %s84 = sphi 0, %s82
      %s85 = sphi 0, %s84
      %s99 = sphi 0, %s85
      %s103 = sphi 0, %s103
      %s105 = sphi 0, %s103
      %s106 = sphi 0, %s105
      %s120 = sphi 0, %s106
      %s124 = sphi 0, %s124
      %s126 = sphi 0, %s124
      %s127 = sphi 0, %s126
      %s141 = sphi 0, %s127
      %s145 = sphi 0, %s145
      %s147 = sphi 0, %s145
      %s148 = sphi 0, %s147
      %s162 = sphi 0, %s148
      %s166 = sphi 0, %s166
      %s168 = sphi 0, %s166
      %s169 = sphi 0, %s168
      %s183 = sphi 0, %s169
      %s187 = sphi 0, %s187
      %s189 = sphi 0, %s187
      %s190 = sphi 0, %s189
      %s204 = sphi 0, %s190
    $region4: #{tpu_custom_call.1} parent=1 // loop_header_branch
      %25 = sbr.rel (%p23) target = $region8
    $region5: #{tpu_custom_call.1} parent=1 // loop_body
      %s27 = ssub.s32 %s22, 1
      %s28 = ssub.s32 %s22, 2
      %s29 = sadd.s32 %s22, 1
      %s30 = ssub.s32 %s22, %s29
      %p31 = scmp.eq.s32.totalorder %s30, 0
      %s33 = sadd.s32 %s32, 1
      %s34 = scalar_select %p31, %s32, %s33
      %p37 = pneg %p31
      %p38 = scmp.eq.s32.totalorder %s22, 1
      %p39 = por %p37, %p38
      %p40 = scmp.ne.s32.totalorder %s32, %s35
      %p41 = scmp.eq.s32.totalorder %s22, 0
      %p42 = por %p40, %p41
      %p43 = scmp.ne.s32.totalorder %s32, %s35
      %p44 = scmp.eq.s32.totalorder %s27, 1
      %p45 = por %p43, %p44
      %p46 = scmp.ne.s32.totalorder %s35, %s36
      %p47 = scmp.eq.s32.totalorder %s27, 0
      %p48 = por %p46, %p47
      %p49 = scmp.ne.s32.totalorder %s35, %s36
      %p50 = scmp.eq.s32.totalorder %s28, 1
      %p51 = por %p49, %p50
      %p53 = scmp.ne.s32.totalorder %s36, %s52
      %p54 = scmp.eq.s32.totalorder %s28, 0
      %p55 = por %p53, %p54
      %s56 = ssub.s32 %s22, %s29
      %p57 = scmp.eq.s32.totalorder %s56, 0
      %s59 = sadd.s32 %s58, 1
      %s60 = scalar_select %p57, %s58, %s59
      %p63 = pneg %p57
      %p64 = scmp.eq.s32.totalorder %s22, 1
      %p65 = por %p63, %p64
      %p66 = scmp.ne.s32.totalorder %s58, %s61
      %p67 = scmp.eq.s32.totalorder %s22, 0
      %p68 = por %p66, %p67
      %p69 = scmp.ne.s32.totalorder %s58, %s61
      %p70 = scmp.eq.s32.totalorder %s27, 1
      %p71 = por %p69, %p70
      %p72 = scmp.ne.s32.totalorder %s61, %s62
      %p73 = scmp.eq.s32.totalorder %s27, 0
      %p74 = por %p72, %p73
      %p75 = scmp.ne.s32.totalorder %s61, %s62
      %p76 = scmp.eq.s32.totalorder %s28, 1
      %p77 = por %p75, %p76
      %p79 = scmp.ne.s32.totalorder %s62, %s78
      %p80 = scmp.eq.s32.totalorder %s28, 0
      %p81 = por %p79, %p80
      %s83 = sadd.s32 %s82, 1
      %p86 = scmp.eq.s32.totalorder %s22, 1
      %p87 = scmp.ne.s32.totalorder %s82, %s84
      %p88 = scmp.eq.s32.totalorder %s22, 0
      %p89 = por %p87, %p88
      %p90 = scmp.ne.s32.totalorder %s82, %s84
      %p91 = scmp.eq.s32.totalorder %s27, 1
      %p92 = por %p90, %p91
      %p93 = scmp.ne.s32.totalorder %s84, %s85
      %p94 = scmp.eq.s32.totalorder %s27, 0
      %p95 = por %p93, %p94
      %p96 = scmp.ne.s32.totalorder %s84, %s85
      %p97 = scmp.eq.s32.totalorder %s28, 1
      %p98 = por %p96, %p97
      %p100 = scmp.ne.s32.totalorder %s85, %s99
      %p101 = scmp.eq.s32.totalorder %s28, 0
      %p102 = por %p100, %p101
      %s104 = sadd.s32 %s103, 1
      %p107 = scmp.eq.s32.totalorder %s22, 1
      %p108 = scmp.ne.s32.totalorder %s103, %s105
      %p109 = scmp.eq.s32.totalorder %s22, 0
      %p110 = por %p108, %p109
      %p111 = scmp.ne.s32.totalorder %s103, %s105
      %p112 = scmp.eq.s32.totalorder %s27, 1
      %p113 = por %p111, %p112
      %p114 = scmp.ne.s32.totalorder %s105, %s106
      %p115 = scmp.eq.s32.totalorder %s27, 0
      %p116 = por %p114, %p115
      %p117 = scmp.ne.s32.totalorder %s105, %s106
      %p118 = scmp.eq.s32.totalorder %s28, 1
      %p119 = por %p117, %p118
      %p121 = scmp.ne.s32.totalorder %s106, %s120
      %p122 = scmp.eq.s32.totalorder %s28, 0
      %p123 = por %p121, %p122
      %s125 = sadd.s32 %s124, 1
      %p128 = scmp.eq.s32.totalorder %s22, 1
      %p129 = scmp.ne.s32.totalorder %s124, %s126
      %p130 = scmp.eq.s32.totalorder %s22, 0
      %p131 = por %p129, %p130
      %p132 = scmp.ne.s32.totalorder %s124, %s126
      %p133 = scmp.eq.s32.totalorder %s27, 1
      %p134 = por %p132, %p133
      %p135 = scmp.ne.s32.totalorder %s126, %s127
      %p136 = scmp.eq.s32.totalorder %s27, 0
      %p137 = por %p135, %p136
      %p138 = scmp.ne.s32.totalorder %s126, %s127
      %p139 = scmp.eq.s32.totalorder %s28, 1
      %p140 = por %p138, %p139
      %p142 = scmp.ne.s32.totalorder %s127, %s141
      %p143 = scmp.eq.s32.totalorder %s28, 0
      %p144 = por %p142, %p143
      %s146 = sadd.s32 %s145, 1
      %p149 = scmp.eq.s32.totalorder %s22, 1
      %p150 = scmp.ne.s32.totalorder %s145, %s147
      %p151 = scmp.eq.s32.totalorder %s22, 0
      %p152 = por %p150, %p151
      %p153 = scmp.ne.s32.totalorder %s145, %s147
      %p154 = scmp.eq.s32.totalorder %s27, 1
      %p155 = por %p153, %p154
      %p156 = scmp.ne.s32.totalorder %s147, %s148
      %p157 = scmp.eq.s32.totalorder %s27, 0
      %p158 = por %p156, %p157
      %p159 = scmp.ne.s32.totalorder %s147, %s148
      %p160 = scmp.eq.s32.totalorder %s28, 1
      %p161 = por %p159, %p160
      %p163 = scmp.ne.s32.totalorder %s148, %s162
      %p164 = scmp.eq.s32.totalorder %s28, 0
      %p165 = por %p163, %p164
      %s167 = sadd.s32 %s166, 1
      %p170 = scmp.eq.s32.totalorder %s22, 1
      %p171 = scmp.ne.s32.totalorder %s166, %s168
      %p172 = scmp.eq.s32.totalorder %s22, 0
      %p173 = por %p171, %p172
      %p174 = scmp.ne.s32.totalorder %s166, %s168
      %p175 = scmp.eq.s32.totalorder %s27, 1
      %p176 = por %p174, %p175
      %p177 = scmp.ne.s32.totalorder %s168, %s169
      %p178 = scmp.eq.s32.totalorder %s27, 0
      %p179 = por %p177, %p178
      %p180 = scmp.ne.s32.totalorder %s168, %s169
      %p181 = scmp.eq.s32.totalorder %s28, 1
      %p182 = por %p180, %p181
      %p184 = scmp.ne.s32.totalorder %s169, %s183
      %p185 = scmp.eq.s32.totalorder %s28, 0
      %p186 = por %p184, %p185
      %s188 = sadd.s32 %s187, 1
      %p191 = scmp.eq.s32.totalorder %s22, 1
      %p192 = scmp.ne.s32.totalorder %s187, %s189
      %p193 = scmp.eq.s32.totalorder %s22, 0
      %p194 = por %p192, %p193
      %p195 = scmp.ne.s32.totalorder %s187, %s189
      %p196 = scmp.eq.s32.totalorder %s27, 1
      %p197 = por %p195, %p196
      %p198 = scmp.ne.s32.totalorder %s189, %s190
      %p199 = scmp.eq.s32.totalorder %s27, 0
      %p200 = por %p198, %p199
      %p201 = scmp.ne.s32.totalorder %s189, %s190
      %p202 = scmp.eq.s32.totalorder %s28, 1
      %p203 = por %p201, %p202
      %p205 = scmp.ne.s32.totalorder %s190, %s204
      %p206 = scmp.eq.s32.totalorder %s28, 0
      %p207 = por %p205, %p206
      %p208 = scmp.le.s32.totalorder 1, %s22
      %p209 = scmp.lt.s32.totalorder %s22, 3
      %p210 = pnand %p208, %p209
      %p211 = pneg %p210
      // Predicated region
      $region9: #{tpu_custom_call.1} parent=5 // pred_check
        _
      $region10: #{tpu_custom_call.1} parent=5 // pred_check_branch
        %213 = sbr.rel (%p210) target = $region12
      $region11: #{tpu_custom_call.1} parent=5 // pred_region
        %s214 = ssub.s32 %s22, 1
        // Predicated region
        $region13: #{tpu_custom_call.1} parent=11 // pred_check
          %p215 = pneg %p95
        $region14: #{tpu_custom_call.1} parent=11 // pred_check_branch
          %217 = sbr.rel (%p215) target = $region16
        $region15: #{tpu_custom_call.1} parent=11 // pred_region
          _
        $region16: #{tpu_custom_call.1} parent=11 // pred_fallthru
          _
        // Predicated region
        $region17: #{tpu_custom_call.1} parent=11 // pred_check
          %p218 = pneg %p116
        $region18: #{tpu_custom_call.1} parent=11 // pred_check_branch
          %220 = sbr.rel (%p218) target = $region20
        $region19: #{tpu_custom_call.1} parent=11 // pred_region
          _
        $region20: #{tpu_custom_call.1} parent=11 // pred_fallthru
          _
        // Predicated region
        $region21: #{tpu_custom_call.1} parent=11 // pred_check
          %p221 = pneg %p137
        $region22: #{tpu_custom_call.1} parent=11 // pred_check_branch
          %223 = sbr.rel (%p221) target = $region24
        $region23: #{tpu_custom_call.1} parent=11 // pred_region
          _
        $region24: #{tpu_custom_call.1} parent=11 // pred_fallthru
          _
      $region12: #{tpu_custom_call.1} parent=5 // pred_fallthru
        _
      %p224 = scmp.lt.s32.totalorder %s22, 2
      // Predicated region
      $region25: #{tpu_custom_call.1} parent=5 // pred_check
        %p225 = pneg %p224
      $region26: #{tpu_custom_call.1} parent=5 // pred_check_branch
        %227 = sbr.rel (%p225) target = $region28
      $region27: #{tpu_custom_call.1} parent=5 // pred_region
        // Predicated region
        $region29: #{tpu_custom_call.1} parent=27 // pred_check
          %p228 = pneg %p42
        $region30: #{tpu_custom_call.1} parent=27 // pred_check_branch
          %230 = sbr.rel (%p228) target = $region32
        $region31: #{tpu_custom_call.1} parent=27 // pred_region
          %s231 = sand.u32 %s32, 1
          %s232 = scalar_lea.sflag [#allocation3], %s231
          %s233 = sand.u32 %s32, 1
          %s234 = smul.addr %s233, 4
          %s235 = scalar_lea.vmem [#allocation2], %s234
          %237 = vsyncadd %s232, 0
          %s238 = smul.addr %s22, 2
          %s239 = smul.addr %s238, 2
          %s240 = scalar_lea.hbm %s0, %s239
          %s242 = sshll.u32 %s240, 4
          %s243 = int_to_ptr.hbm [resolvable:$true] %s242
          %s244 = sshll.u32 %s235, 4
          %s245 = int_to_ptr.vmem [resolvable:$true] %s244
          %247 = dma.hbm_to_vmem [thread:$0]  %s243, 64, %s245, %s232
        $region32: #{tpu_custom_call.1} parent=27 // pred_fallthru
          _
        // Predicated region
        $region33: #{tpu_custom_call.1} parent=27 // pred_check
          %p248 = pneg %p68
        $region34: #{tpu_custom_call.1} parent=27 // pred_check_branch
          %250 = sbr.rel (%p248) target = $region36
        $region35: #{tpu_custom_call.1} parent=27 // pred_region
          %s251 = sand.u32 %s58, 1
          %s252 = scalar_lea.sflag [#allocation6], %s251
          %s253 = sand.u32 %s58, 1
          %s254 = smul.addr %s253, 32
          %s255 = scalar_lea.vmem [#allocation5], %s254
          %257 = vsyncadd %s252, 0
          %s258 = smul.addr %s22, 8
          %s259 = smul.addr %s258, 4
          %s260 = scalar_lea.hbm %s1, %s259
          %s261 = sshll.u32 %s260, 4
          %s262 = int_to_ptr.hbm [resolvable:$true] %s261
          %s263 = sshll.u32 %s255, 4
          %s264 = int_to_ptr.vmem [resolvable:$true] %s263
          %269 = dma.hbm_to_vmem [thread:$0]  %s262, 512, %s264, %s252, 128, 128, 8
        $region36: #{tpu_custom_call.1} parent=27 // pred_fallthru
          _
      $region28: #{tpu_custom_call.1} parent=5 // pred_fallthru
        _
      %p270 = scmp.le.s32.totalorder 1, %s22
      %p271 = scmp.lt.s32.totalorder %s22, 3
      %p272 = pnand %p270, %p271
      %p273 = pneg %p272
      // Predicated region
      $region37: #{tpu_custom_call.1} parent=5 // pred_check
        _
      $region38: #{tpu_custom_call.1} parent=5 // pred_check_branch
        %275 = sbr.rel (%p272) target = $region40
      $region39: #{tpu_custom_call.1} parent=5 // pred_region
        %s276 = ssub.s32 %s22, 1
        %s277 = sand.u32 %s35, 1
        %s278 = scalar_lea.sflag [#allocation3], %s277
        %s279 = sand.u32 %s35, 1
        %s280 = smul.addr %s279, 4
        %s281 = scalar_lea.vmem [#allocation2], %s280
        // Predicated region
        $region41: #{tpu_custom_call.1} parent=39 // pred_check
          %p282 = pneg %p48
        $region42: #{tpu_custom_call.1} parent=39 // pred_check_branch
          %284 = sbr.rel (%p282) target = $region44
        $region43: #{tpu_custom_call.1} parent=39 // pred_region
          %286 = dma.done %s278, 64
        $region44: #{tpu_custom_call.1} parent=39 // pred_fallthru
          _
        %s287 = sand.u32 %s61, 1
        %s288 = scalar_lea.sflag [#allocation6], %s287
        %s289 = sand.u32 %s61, 1
        %s290 = smul.addr %s289, 32
        %s291 = scalar_lea.vmem [#allocation5], %s290
        // Predicated region
        $region45: #{tpu_custom_call.1} parent=39 // pred_check
          %p292 = pneg %p74
        $region46: #{tpu_custom_call.1} parent=39 // pred_check_branch
          %294 = sbr.rel (%p292) target = $region48
        $region47: #{tpu_custom_call.1} parent=39 // pred_region
          %296 = dma.done %s288, 512
        $region48: #{tpu_custom_call.1} parent=39 // pred_fallthru
          _
        %s297 = sand.u32 %s35, 1
        %s298 = scalar_lea.sflag [#allocation3], %s297
        %s299 = sand.u32 %s35, 1
        %s300 = smul.addr %s299, 4
        %s301 = scalar_lea.vmem [#allocation2], %s300
        %p302 = pneg %p48
        %p303 = pneg %p45
        %s304 = sand.u32 %s61, 1
        %s305 = scalar_lea.sflag [#allocation6], %s304
        %s306 = sand.u32 %s61, 1
        %s307 = smul.addr %s306, 32
        %s308 = scalar_lea.vmem [#allocation5], %s307
        %p309 = pneg %p74
        %p310 = pneg %p71
        %p311 = pneg %p95
        %p312 = pneg %p92
        %p313 = pneg %p116
        %p314 = pneg %p113
        %p315 = pneg %p137
        %p316 = pneg %p134
        %p317 = pneg %p158
        %p318 = pneg %p155
        %p319 = pneg %p179
        %p320 = pneg %p176
        %p321 = pneg %p200
        %p322 = pneg %p197
        %v324 = vld [vmem:[%s281] sm:$0xf]
        %v325 = vld [vmem:[%s291] sm:$0xff]
        %v326 = vld [vmem:[%s291 + $0x8] sm:$0xff]
        %v327 = vld [vmem:[%s291 + $0x10] sm:$0xff]
        %v328 = vld [vmem:[%s291 + $0x18] sm:$0xff]
        %330 = vst [vmem:[#allocation1] ss:$4 sm:$0xff] %v324
        %v331 = vld.sshfl [vmem:[#allocation1] sm:$0xff pattern:$0x73625140]
        %v332 = vld.sshfl [vmem:[#allocation1 + $0x8] sm:$0xff pattern:$0x73625140]
        %v339 = vunpack.c.l.b16 %v325
        %v340 = vunpack.c.h.b16 %v325
        %v341 = vunpack.c.l.b16 %v326
        %v342 = vunpack.c.h.b16 %v326
        %v343 = vunpack.c.l.b16 %v327
        %v344 = vunpack.c.h.b16 %v327
        %v345 = vunpack.c.l.b16 %v328
        %v346 = vunpack.c.h.b16 %v328
        %v347 = vpack.c.b16 %v341, %v339
        %v348 = vpack.c.b16 %v342, %v340
        %v349 = vpack.c.b16 %v345, %v343
        %v350 = vpack.c.b16 %v346, %v344
        %355 = vmatpush.bf16.xpose.msra.mxu0 0
        %356 = vmatpush.bf16.xpose.msra.mxu0 0
        %357 = vmatpush.bf16.xpose.msra.mxu0 0
        %358 = vmatpush.bf16.xpose.msra.mxu0 0
        %359 = vmatpush.bf16.xpose.msra.mxu0 0
        %360 = vmatpush.bf16.xpose.msra.mxu0 0
        %361 = vmatpush.bf16.xpose.msra.mxu0 %v349
        %362 = vmatpush.bf16.xpose.msra.mxu0 %v347
        %363 = vmatmul.bf16.gmra.mxu0 %v331
        %v364 = vpop.f32.mrf.mxu0
        %v365 = vadd.f32 0.0, %v364
        %v366 = vpop.f32.mrf.mxu0
        %367 = vdwg.mxu0
        %368 = vmatpush.bf16.xpose.msra.mxu0 0
        %369 = vmatpush.bf16.xpose.msra.mxu0 0
        %370 = vmatpush.bf16.xpose.msra.mxu0 0
        %371 = vmatpush.bf16.xpose.msra.mxu0 0
        %372 = vmatpush.bf16.xpose.msra.mxu0 0
        %373 = vmatpush.bf16.xpose.msra.mxu0 0
        %374 = vmatpush.bf16.xpose.msra.mxu0 %v350
        %375 = vmatpush.bf16.xpose.msra.mxu0 %v348
        %376 = vmatmul.bf16.gmra.mxu0 %v332
        %v377 = vpop.f32.mrf.mxu0
        %v378 = vadd.f32 %v365, %v377
        %v379 = vpop.f32.mrf.mxu0
        %380 = vdwg.mxu0
        %v381 = vmul.f32 %v378, %v378
        %vm382 = vcmask 257024
        %v383 = vsel %vm382, %v381, 0.0
        %384 = vadd.xlane.f32.xlu0 %v383
        %v385 = vpop.xlane.xlu0 %384
        %v386 = vmax.f32 %v385, 1e-24
        %v387 = vrsqrt.pop %v386
        %v388 = vmul.f32 %v387, %v386
        %v389 = vmul.f32 %v388, %v387
        %v390 = vmul.f32 0.5, %v389
        %v391 = vsub.f32 1.5, %v390
        %v392 = vmul.f32 %v387, %v391
        %vm393 = vweird.f32 %v386
        %vm394 = vweird.f32 %v387
        %vm395 = vmor %vm393, %vm394
        %v396 = vsel %vm395, %v387, %v392
        %v397 = vmul.f32 %v378, %v396
        %s398 = smul.u32 %s27, 4
        %s399 = scalar_lea.vmem [#allocation8], %s398
        %400 = vst.msk [vmem:[%s399] sm:$0xf] %vm382, %v397
        %p401 = scmp.eq.s32.totalorder %s27, 1
        // Predicated region
        $region49: #{tpu_custom_call.1} parent=39 // pred_check
          %p402 = pneg %p401
        $region50: #{tpu_custom_call.1} parent=39 // pred_check_branch
          %404 = sbr.rel (%p402) target = $region52
        $region51: #{tpu_custom_call.1} parent=39 // pred_region
          %v405 = vld [vmem:[#allocation8] sm:$0xf]
          %v406 = vld [vmem:[#allocation8 + $0x4] sm:$0xf]
          %v407 = vld [vmem:[%s2] sm:$0xf]
          %v408 = vld [vmem:[%s3] sm:$0x1]
          %v409 = vld [vmem:[%s3 + $0x1] sm:$0x1]
          %v410 = vld [vmem:[%s4] sm:$0x1]
          %v411 = vld [vmem:[%s4 + $0x1] sm:$0x1]
          %v414 = vperm.slane %v408, 0
          %v415 = vperm.slane %v409, 0
          %416 = vset.pattern.permute.xlu0 0
          %417 = vperm.xlu0 %416, %v414
          %v418 = vpop.permute.xlu0 %417
          %420 = vset.pattern.permute.xlu0 0
          %421 = vperm.xlu0 %420, %v415
          %v422 = vpop.permute.xlu0 %421
          %v424 = vmul.f32 %v405, %v418
          %v425 = vmul.f32 %v406, %v422
          %v426 = vsel %vm382, %v424, 0.0
          %v427 = vsel %vm382, %v425, 0.0
          %v428 = vadd.f32 %v426, %v427
          %vm429 = vcmask 0
          %v430 = vsel %vm429, %v408, 0.0
          %v431 = vsel %vm429, %v409, 0.0
          %v432 = vadd.f32 %v430, %v431
          %s434 = vtos %v432
          %v435 = vstv %s434
          %v437 = vmul.f32 %v407, %v435
          %v438 = vsub.f32 %v428, %v437
          %v439 = vmul.f32 %v438, 0.5
          %v440 = vmul.f32 %v439, 0.05
          %v441 = vadd.f32 %v440, %v407
          %442 = vst.msk [vmem:[#allocation10] sm:$0xf] %vm382, %v441
          %v443 = vsub.f32 %v405, %v441
          %v444 = vsub.f32 %v406, %v441
          %v445 = vmul.f32 %v443, %v443
          %v446 = vmul.f32 %v444, %v444
          %v447 = vsel %vm382, %v445, 0.0
          %448 = vadd.xlane.f32.xlu0 %v447
          %v449 = vpop.xlane.xlu0 %448
          %v450 = vsel %vm382, %v446, 0.0
          %451 = vadd.xlane.f32.xlu0 %v450
          %v452 = vpop.xlane.xlu0 %451
          %vm453 = vcmask 1043456
          %v454 = vsel %vm453, %v449, 0.0
          %v455 = vrot.slane %v454, 4
          %v456 = vadd.f32 %v454, %v455
          %v457 = vrot.slane %v456, 2
          %v458 = vadd.f32 %v456, %v457
          %v459 = vrot.slane %v458, 1
          %v460 = vadd.f32 %v458, %v459
          %v461 = vsel %vm453, %v452, 0.0
          %v462 = vrot.slane %v461, 4
          %v463 = vadd.f32 %v461, %v462
          %v464 = vrot.slane %v463, 2
          %v465 = vadd.f32 %v463, %v464
          %v466 = vrot.slane %v465, 1
          %v467 = vadd.f32 %v465, %v466
          %v468 = vrsqrt.pop %v460
          %v469 = vmul.f32 %v468, %v460
          %v470 = vmul.f32 %v469, %v468
          %v471 = vmul.f32 0.5, %v470
          %v472 = vsub.f32 1.5, %v471
          %v473 = vmul.f32 %v468, %v472
          %v474 = vmul.f32 %v460, %v473
          %vm475 = vcmp.eq.f32.partialorder %v460, inf
          %v476 = vsel %vm475, %v460, %v474
          %vm477 = vcmp.eq.f32.partialorder %v460, 0.0
          %v478 = vand.u32 %v460, 2147483648
          %v479 = vsel %vm477, %v478, %v476
          %v480 = vrsqrt.pop %v467
          %v481 = vmul.f32 %v480, %v467
          %v482 = vmul.f32 %v481, %v480
          %v483 = vmul.f32 0.5, %v482
          %v484 = vsub.f32 1.5, %v483
          %v485 = vmul.f32 %v480, %v484
          %v486 = vmul.f32 %v467, %v485
          %vm487 = vcmp.eq.f32.partialorder %v467, inf
          %v488 = vsel %vm487, %v467, %v486
          %vm489 = vcmp.eq.f32.partialorder %v467, 0.0
          %v490 = vand.u32 %v467, 2147483648
          %v491 = vsel %vm489, %v490, %v488
          %vm492 = vcmp.gt.f32.partialorder %v410, 0.0
          %vm493 = vcmp.gt.f32.partialorder %v411, 0.0
          %vm494 = vcmp.lt.f32.partialorder %v410, 0.0
          %vm495 = vcmp.lt.f32.partialorder %v411, 0.0
          %v496 = vsel %vm494, -1.0, 0.0
          %v497 = vsel %vm495, -1.0, 0.0
          %v498 = vsel %vm492, 1.0, %v496
          %v499 = vsel %vm493, 1.0, %v497
          %v500 = vmul.f32 %v479, %v498
          %v501 = vmul.f32 %v491, %v499
          %v502 = vsub.f32 %v500, %v410
          %v503 = vsub.f32 %v501, %v411
          %v504 = vmax.f32 %v502, 0.0
          %v505 = vmax.f32 %v503, 0.0
          %v506 = vsel %vm429, %v504, 0.0
          %v507 = vsel %vm429, %v505, 0.0
          %v508 = vadd.f32 %v506, %v507
          %v509 = vmul.f32 %v508, 0.5
          %v511 = vrot.slane %v441, 1
          %v512 = vrot.slane %v441, 2
          %v513 = vrot.slane %v441, 3
          %v514 = vperm.slane %v441, 0
          %v515 = vperm.slane %v511, 0
          %v516 = vperm.slane %v512, 0
          %v517 = vperm.slane %v513, 0
          %v522 = vsub.f32 %v514, %v441
          %v523 = vsub.f32 %v515, %v441
          %v524 = vsub.f32 %v516, %v441
          %v525 = vsub.f32 %v517, %v441
          %v526 = vmul.f32 %v522, %v522
          %v527 = vmul.f32 %v523, %v523
          %v528 = vmul.f32 %v524, %v524
          %v529 = vmul.f32 %v525, %v525
          %v530 = vsel %vm382, %v526, 0.0
          %531 = vadd.xlane.f32.xlu0 %v530
          %v532 = vpop.xlane.xlu0 %531
          %v533 = vsel %vm382, %v527, 0.0
          %534 = vadd.xlane.f32.xlu0 %v533
          %v535 = vpop.xlane.xlu0 %534
          %v536 = vsel %vm382, %v528, 0.0
          %537 = vadd.xlane.f32.xlu0 %v536
          %v538 = vpop.xlane.xlu0 %537
          %v539 = vsel %vm382, %v529, 0.0
          %540 = vadd.xlane.f32.xlu0 %v539
          %v541 = vpop.xlane.xlu0 %540
          %v542 = vrsqrt.pop %v532
          %v543 = vmul.f32 %v542, %v532
          %v544 = vmul.f32 %v543, %v542
          %v545 = vmul.f32 0.5, %v544
          %v546 = vsub.f32 1.5, %v545
          %v547 = vmul.f32 %v542, %v546
          %v548 = vmul.f32 %v532, %v547
          %vm549 = vcmp.eq.f32.partialorder %v532, inf
          %v550 = vsel %vm549, %v532, %v548
          %vm551 = vcmp.eq.f32.partialorder %v532, 0.0
          %v552 = vand.u32 %v532, 2147483648
          %v553 = vsel %vm551, %v552, %v550
          %v554 = vrsqrt.pop %v535
          %v555 = vmul.f32 %v554, %v535
          %v556 = vmul.f32 %v555, %v554
          %v557 = vmul.f32 0.5, %v556
          %v558 = vsub.f32 1.5, %v557
          %v559 = vmul.f32 %v554, %v558
          %v560 = vmul.f32 %v535, %v559
          %vm561 = vcmp.eq.f32.partialorder %v535, inf
          %v562 = vsel %vm561, %v535, %v560
          %vm563 = vcmp.eq.f32.partialorder %v535, 0.0
          %v564 = vand.u32 %v535, 2147483648
          %v565 = vsel %vm563, %v564, %v562
          %v566 = vrsqrt.pop %v538
          %v567 = vmul.f32 %v566, %v538
          %v568 = vmul.f32 %v567, %v566
          %v569 = vmul.f32 0.5, %v568
          %v570 = vsub.f32 1.5, %v569
          %v571 = vmul.f32 %v566, %v570
          %v572 = vmul.f32 %v538, %v571
          %vm573 = vcmp.eq.f32.partialorder %v538, inf
          %v574 = vsel %vm573, %v538, %v572
          %vm575 = vcmp.eq.f32.partialorder %v538, 0.0
          %v576 = vand.u32 %v538, 2147483648
          %v577 = vsel %vm575, %v576, %v574
          %v578 = vrsqrt.pop %v541
          %v579 = vmul.f32 %v578, %v541
          %v580 = vmul.f32 %v579, %v578
          %v581 = vmul.f32 0.5, %v580
          %v582 = vsub.f32 1.5, %v581
          %v583 = vmul.f32 %v578, %v582
          %v584 = vmul.f32 %v541, %v583
          %vm585 = vcmp.eq.f32.partialorder %v541, inf
          %v586 = vsel %vm585, %v541, %v584
          %vm587 = vcmp.eq.f32.partialorder %v541, 0.0
          %v588 = vand.u32 %v541, 2147483648
          %v589 = vsel %vm587, %v588, %v586
          %v590 = vlaneseq
          %v591 = vshrl.u32 %v590, 7
          %v592 = vlaneseq
          %v593 = vand.u32 %v592, 127
          %vm594 = vcmp.lt.s32.totalorder %v591, %v593
          %v595 = vsel %vm594, 1, 0
          %v596 = vcvt.s32.f32 %v595
          %v597 = vsub.f32 1.0, %v553
          %v598 = vsub.f32 1.0, %v565
          %v599 = vsub.f32 1.0, %v577
          %v600 = vsub.f32 1.0, %v589
          %v601 = vmax.f32 %v597, 0.0
          %v602 = vmax.f32 %v598, 0.0
          %v603 = vmax.f32 %v599, 0.0
          %v604 = vmax.f32 %v600, 0.0
          %v606 = vperm.slane %v596, 0
          %v607 = vlaneseq
          %v608 = vshrl.u32 %v607, 7
          %610 = vset.pattern.permute.xlu0 %v608
          %611 = vperm.xlu0 %610, %v606
          %v612 = vpop.permute.xlu0 %611
          %v613 = vperm.slane %v596, 1
          %v614 = vlaneseq
          %v615 = vshrl.u32 %v614, 7
          %617 = vset.pattern.permute.xlu0 %v615
          %618 = vperm.xlu0 %617, %v613
          %v619 = vpop.permute.xlu0 %618
          %v620 = vperm.slane %v596, 2
          %v621 = vlaneseq
          %v622 = vshrl.u32 %v621, 7
          %624 = vset.pattern.permute.xlu0 %v622
          %625 = vperm.xlu0 %624, %v620
          %v626 = vpop.permute.xlu0 %625
          %v627 = vperm.slane %v596, 3
          %v628 = vlaneseq
          %v629 = vshrl.u32 %v628, 7
          %631 = vset.pattern.permute.xlu0 %v629
          %632 = vperm.xlu0 %631, %v627
          %v633 = vpop.permute.xlu0 %632
          %v638 = vmul.f32 %v601, %v612
          %v639 = vmul.f32 %v602, %v619
          %v640 = vmul.f32 %v603, %v626
          %v641 = vmul.f32 %v604, %v633
          %646 = vset.pattern.permute.xlu0 0
          %647 = vperm.xlu0 %646, %v638
          %v648 = vpop.permute.xlu0 %647
          %649 = vset.pattern.permute.xlu0 0
          %650 = vperm.xlu0 %649, %v639
          %v651 = vpop.permute.xlu0 %650
          %652 = vset.pattern.permute.xlu0 0
          %653 = vperm.xlu0 %652, %v640
          %v654 = vpop.permute.xlu0 %653
          %655 = vset.pattern.permute.xlu0 0
          %656 = vperm.xlu0 %655, %v641
          %v657 = vpop.permute.xlu0 %656
          %v658 = vperm.slane %v648, %v593
          %v659 = vperm.slane %v651, %v593
          %v660 = vperm.slane %v654, %v593
          %v661 = vperm.slane %v657, %v593
          %vm662 = vcmask 1041409
          %v663 = vsel %vm662, %v659, %v658
          %vm664 = vcmask 1042434
          %v665 = vsel %vm664, %v660, %v663
          %vm666 = vcmask 1043459
          %v667 = vsel %vm666, %v661, %v665
          %vm669 = vcmask 27648
          %v670 = vsel %vm669, %v667, 0.0
          %671 = vadd.xlane.f32.xlu0 %v670
          %v672 = vpop.xlane.xlu0 %671
          %v673 = vsel %vm453, %v672, 0.0
          %v674 = vrot.slane %v673, 4
          %v675 = vadd.f32 %v673, %v674
          %v676 = vrot.slane %v675, 2
          %v677 = vadd.f32 %v675, %v676
          %v678 = vrot.slane %v677, 1
          %v679 = vadd.f32 %v677, %v678
          %v680 = vmul.f32 %v679, 5.0
          %v681 = vadd.f32 %v509, %v680
          %682 = vst.msk [vmem:[#allocation7] sm:$0x1] %vm429, %v681
        $region52: #{tpu_custom_call.1} parent=39 // pred_fallthru
          _
        // Predicated region
        $region53: #{tpu_custom_call.1} parent=39 // pred_check
          %p683 = pneg %p155
        $region54: #{tpu_custom_call.1} parent=39 // pred_check_branch
          %685 = sbr.rel (%p683) target = $region56
        $region55: #{tpu_custom_call.1} parent=39 // pred_region
          %687 = vsyncadd [#allocation4], 0
          %s689 = sshll.u32 [#allocation7], 4
          %s690 = int_to_ptr.vmem [resolvable:$true] %s689
          %s691 = sshll.u32 %s5, 4
          %s692 = int_to_ptr.hbm [resolvable:$true] %s691
          %694 = dma.vmem_to_hbm [thread:$0]  %s690, 16, %s692, [#allocation4]
        $region56: #{tpu_custom_call.1} parent=39 // pred_fallthru
          _
        // Predicated region
        $region57: #{tpu_custom_call.1} parent=39 // pred_check
          %p695 = pneg %p176
        $region58: #{tpu_custom_call.1} parent=39 // pred_check_branch
          %697 = sbr.rel (%p695) target = $region60
        $region59: #{tpu_custom_call.1} parent=39 // pred_region
          %699 = vsyncadd [#allocation9], 0
          %s700 = sshll.u32 [#allocation8], 4
          %s701 = int_to_ptr.vmem [resolvable:$true] %s700
          %s702 = sshll.u32 %s6, 4
          %s703 = int_to_ptr.hbm [resolvable:$true] %s702
          %708 = dma.vmem_to_hbm [thread:$0]  %s701, 128, %s703, [#allocation9], 64, 64, 4
        $region60: #{tpu_custom_call.1} parent=39 // pred_fallthru
          _
        // Predicated region
        $region61: #{tpu_custom_call.1} parent=39 // pred_check
          %p709 = pneg %p197
        $region62: #{tpu_custom_call.1} parent=39 // pred_check_branch
          %711 = sbr.rel (%p709) target = $region64
        $region63: #{tpu_custom_call.1} parent=39 // pred_region
          %713 = vsyncadd [#allocation9], 0
          %s715 = sshll.u32 [#allocation10], 4
          %s716 = int_to_ptr.vmem [resolvable:$true] %s715
          %s717 = sshll.u32 %s7, 4
          %s718 = int_to_ptr.hbm [resolvable:$true] %s717
          %720 = dma.vmem_to_hbm [thread:$0]  %s716, 64, %s718, [#allocation9]
        $region64: #{tpu_custom_call.1} parent=39 // pred_fallthru
          _
        // Predicated region
        $region65: #{tpu_custom_call.1} parent=39 // pred_check
          %p721 = pneg %p155
        $region66: #{tpu_custom_call.1} parent=39 // pred_check_branch
          %723 = sbr.rel (%p721) target = $region68
        $region67: #{tpu_custom_call.1} parent=39 // pred_region
          %725 = dma.done [#allocation4], 16
        $region68: #{tpu_custom_call.1} parent=39 // pred_fallthru
          _
        // Predicated region
        $region69: #{tpu_custom_call.1} parent=39 // pred_check
          %p726 = pneg %p176
        $region70: #{tpu_custom_call.1} parent=39 // pred_check_branch
          %728 = sbr.rel (%p726) target = $region72
        $region71: #{tpu_custom_call.1} parent=39 // pred_region
          %730 = dma.done [#allocation9], 128
        $region72: #{tpu_custom_call.1} parent=39 // pred_fallthru
          _
        // Predicated region
        $region73: #{tpu_custom_call.1} parent=39 // pred_check
          %p731 = pneg %p197
        $region74: #{tpu_custom_call.1} parent=39 // pred_check_branch
          %733 = sbr.rel (%p731) target = $region76
        $region75: #{tpu_custom_call.1} parent=39 // pred_region
          %735 = dma.done [#allocation9], 64
        $region76: #{tpu_custom_call.1} parent=39 // pred_fallthru
          _
      $region40: #{tpu_custom_call.1} parent=5 // pred_fallthru
        _
      %p736 = scmp.le.s32.totalorder 2, %s22
      // Predicated region
      $region77: #{tpu_custom_call.1} parent=5 // pred_check
        %p737 = pneg %p736
      $region78: #{tpu_custom_call.1} parent=5 // pred_check_branch
        %739 = sbr.rel (%p737) target = $region80
      $region79: #{tpu_custom_call.1} parent=5 // pred_region
        %s740 = ssub.s32 %s22, 2
      $region80: #{tpu_custom_call.1} parent=5 // pred_fallthru
        _
    $region6: #{tpu_custom_call.1} parent=1 // loop_footer
      %s26 = sadd.s32 1, %s22
    $region7: #{tpu_custom_call.1} parent=1 // loop_footer_branch
      %21 = sbr.rel target = $region3
    $region8: #{tpu_custom_call.1} parent=1 // loop_exit
      _
    %741 = vsyncpa [#allocation3], 1
    %s742 = scalar_lea.sflag [#allocation3], 1
    %743 = vsyncpa %s742, 1
    %744 = vsyncpa [#allocation6], 1
    %s745 = scalar_lea.sflag [#allocation6], 1
    %746 = vsyncpa %s745, 1
    %747 = vsyncpa [#allocation4], 1
    %s748 = scalar_lea.sflag [#allocation4], 1
    %749 = vsyncpa %s748, 1
    %750 = vsyncpa [#allocation9], 1

</llo_original>
